<compile_context>
chip_gen: v5e
topology: v5e:2x2
jax: 0.10.0
libtpu: 0.0.40
codegen_flags: <defaults>
</compile_context>

<pallas_src>
import jax
import jax.numpy as jnp
import numpy as np
from jax.experimental import pallas as pl
from jax.experimental.pallas import tpu as pltpu

HIDDEN = 256     # fc1/fc2 width (fixed by the module)
OUT_PAD = 128    # fc3 output padded to one full lane group


def _round_up(x: int, m: int) -> int:
    return (x + m - 1) // m * m


def _qnet_kernel(x_ref, w1_ref, b1_ref, w2_ref, b2_ref, w3_ref, b3_ref,
                 out_ref):
    # fc1: one fused bf16 matmul (obs/act concatenated + padded in the wrapper).
    h1 = jnp.dot(x_ref[...], w1_ref[...], preferred_element_type=jnp.float32)
    h1 = jnp.maximum(h1 + b1_ref[...], 0.0)           # bias row-broadcasts

    # fc2: bf16 operands, f32 accumulation.
    h2 = jnp.dot(h1.astype(w2_ref.dtype), w2_ref[...],
                 preferred_element_type=jnp.float32)
    h2 = jnp.maximum(h2 + b2_ref[...], 0.0)

    # fc3: weights pre-padded to (256, 128) -> lane-dense, unmasked store.
    q = jnp.dot(h2.astype(w3_ref.dtype), w3_ref[...],
                preferred_element_type=jnp.float32)
    out_ref[...] = (q + b3_ref[...]).astype(out_ref.dtype)


def qnetwork_forward(obs, act, w1, b1, w2, b2, w3, b3, *, block_b: int = 1024):
    """Pallas forward of the TD3 QNetwork.

    Args:
      obs: (B, obs_dim) observations.
      act: (B, act_dim) actions.
      w1:  (obs_dim + act_dim, 256)  fc1 weight, pre-transposed to (in, out).
      b1:  (256,)
      w2:  (256, 256)                fc2 weight (in, out).
      b2:  (256,)
      w3:  (256, 1)                  fc3 weight (in, out).
      b3:  (1,)
    Returns:
      (B, 1) float32 Q-values, same semantics as the PyTorch module
      (matmuls run on the bf16 MXU path with f32 accumulation).
    """
    B, obs_dim = obs.shape
    _, act_dim = act.shape
    in_dim = obs_dim + act_dim
    assert w1.shape == (in_dim, HIDDEN)

    # --- fc1 input: concat obs/act in the wrapper, pad in_dim, cast to bf16 ---
    in_pad = _round_up(in_dim, 32)
    x = jnp.concatenate([obs, act], axis=1)
    x = jnp.pad(x, ((0, 0), (0, in_pad - in_dim))).astype(jnp.bfloat16)
    w1_p = jnp.pad(w1, ((0, in_pad - in_dim), (0, 0))).astype(jnp.bfloat16)

    # --- remaining weights: bf16 for the MXU; biases stay f32 (accumulator add)
    w2_b = w2.astype(jnp.bfloat16)
    w3_p = jnp.pad(w3, ((0, 0), (0, OUT_PAD - w3.shape[1]))).astype(jnp.bfloat16)
    b1_2d = b1.reshape(1, HIDDEN).astype(jnp.float32)
    b2_2d = b2.reshape(1, HIDDEN).astype(jnp.float32)
    b3_p = jnp.pad(b3.reshape(1, 1).astype(jnp.float32),
                   ((0, 0), (0, OUT_PAD - 1)))

    # --- batch tiling: big tiles, but always >=2 tiles so both v7x TCs work ---
    b16 = _round_up(B, 16)
    half = _round_up(max(b16 // 2, 16), 16)
    bb = min(block_b, half)
    b_pad = _round_up(B, bb)
    if b_pad != B:
        x = jnp.pad(x, ((0, b_pad - B), (0, 0)))
    grid = (b_pad // bb,)

    const = lambda i: (0, 0)   # weights/biases: fetched once, VMEM-resident
    batch = lambda i: (i, 0)   # batch-tiled operands

    cparams = pltpu.CompilerParams(
        dimension_semantics=("parallel",),
        # Only needed for very large batch tiles (v5e default scoped VMEM 16MiB).
        vmem_limit_bytes=(64 * 1024 * 1024 if bb >= 2048 else None),
    )

    # Advisory cost hint so XLA overlaps this small call with surrounding ops.
    flops = 2 * b_pad * (in_pad * HIDDEN + HIDDEN * HIDDEN + HIDDEN * OUT_PAD)
    bytes_accessed = (
        b_pad * in_pad * 2 + b_pad * OUT_PAD * 4
        + (in_pad * HIDDEN + HIDDEN * HIDDEN + HIDDEN * OUT_PAD) * 2
        + (2 * HIDDEN + OUT_PAD) * 4)
    cost = pl.CostEstimate(flops=flops, transcendentals=0,
                           bytes_accessed=bytes_accessed)

    out = pl.pallas_call(
        _qnet_kernel,
        out_shape=jax.ShapeDtypeStruct((b_pad, OUT_PAD), jnp.float32),
        grid=grid,
        in_specs=[
            pl.BlockSpec((bb, in_pad), batch),        # x = [obs | act] tile
            pl.BlockSpec((in_pad, HIDDEN), const),    # W1 (padded, bf16)
            pl.BlockSpec((1, HIDDEN), const),         # b1
            pl.BlockSpec((HIDDEN, HIDDEN), const),    # W2 (bf16)
            pl.BlockSpec((1, HIDDEN), const),         # b2
            pl.BlockSpec((HIDDEN, OUT_PAD), const),   # W3 (padded, bf16)
            pl.BlockSpec((1, OUT_PAD), const),        # b3 (padded)
        ],
        out_specs=pl.BlockSpec((bb, OUT_PAD), batch),
        compiler_params=cparams,
        cost_estimate=cost,
    )(x, w1_p, b1_2d, w2_b, b2_2d, w3_p, b3_p)

    # Lane-dense slab -> the single real Q column (padded batch rows dropped).
    return out[:B, :1]


if __name__ == "__main__":
    # Small MuJoCo-like shapes (e.g. HalfCheetah: obs_dim=17, act_dim=6).
    B, OBS_DIM, ACT_DIM = 32, 17, 6

    key = jax.random.PRNGKey(0)
    ks = jax.random.split(key, 8)

    def bf16ify(x):
        # Keep test data exactly bf16-representable so the bf16 MXU products
        # are exact and the reference comparison tolerance can stay modest.
        return x.astype(jnp.bfloat16).astype(jnp.float32)

    obs = bf16ify(jax.random.normal(ks[0], (B, OBS_DIM), jnp.float32))
    act = bf16ify(jax.random.normal(ks[1], (B, ACT_DIM), jnp.float32))

    in_dim = OBS_DIM + ACT_DIM
    scale = 0.05
    w1 = bf16ify(scale * jax.random.normal(ks[2], (in_dim, HIDDEN), jnp.float32))
    b1 = bf16ify(scale * jax.random.normal(ks[3], (HIDDEN,), jnp.float32))
    w2 = bf16ify(scale * jax.random.normal(ks[4], (HIDDEN, HIDDEN), jnp.float32))
    b2 = bf16ify(scale * jax.random.normal(ks[5], (HIDDEN,), jnp.float32))
    w3 = bf16ify(scale * jax.random.normal(ks[6], (HIDDEN, 1), jnp.float32))
    b3 = bf16ify(scale * jax.random.normal(ks[7], (1,), jnp.float32))

    q = qnetwork_forward(obs, act, w1, b1, w2, b2, w3, b3)
    q = jax.block_until_ready(q)
    assert q.shape == (B, 1)

    # Pure-JAX reference: cat -> fc1 -> relu -> fc2 -> relu -> fc3.
    hp = jax.lax.Precision.HIGHEST
    x = jnp.concatenate([obs, act], axis=1)
    h = jax.nn.relu(jnp.dot(x, w1, precision=hp) + b1)
    h = jax.nn.relu(jnp.dot(h, w2, precision=hp) + b2)
    ref = jnp.dot(h, w3, precision=hp) + b3

    np.testing.assert_allclose(np.asarray(q), np.asarray(ref),
                               rtol=5e-3, atol=5e-3)
    print("KERNEL_OK")
</pallas_src>

<mosaic_0001>
module attributes {stable_mosaic.version = 11 : i64} {
  func.func @_qnet_kernel(%arg0: i32, %arg1: memref<16x32xbf16, #tpu.memory_space<vmem>>, %arg2: memref<32x256xbf16, #tpu.memory_space<vmem>>, %arg3: memref<1x256xf32, #tpu.memory_space<vmem>>, %arg4: memref<256x256xbf16, #tpu.memory_space<vmem>>, %arg5: memref<1x256xf32, #tpu.memory_space<vmem>>, %arg6: memref<256x128xbf16, #tpu.memory_space<vmem>>, %arg7: memref<1x128xf32, #tpu.memory_space<vmem>>, %arg8: memref<16x128xf32, #tpu.memory_space<vmem>>) attributes {dimension_semantics = [#tpu.dimension_semantics<parallel>], iteration_bounds = array<i64: 2>, scalar_prefetch = 0 : i64, scratch_operands = 0 : i64, tpu.core_type = #tpu.core_type<tc>, window_params = [{transform_indices = @transform_0, window_bounds = array<i64: 16, 32>}, {pipeline_mode = #tpu.pipeline_mode<synchronous>, transform_indices = @transform_1, window_bounds = array<i64: 32, 256>}, {pipeline_mode = #tpu.pipeline_mode<synchronous>, transform_indices = @transform_2, window_bounds = array<i64: 1, 256>}, {pipeline_mode = #tpu.pipeline_mode<synchronous>, transform_indices = @transform_3, window_bounds = array<i64: 256, 256>}, {pipeline_mode = #tpu.pipeline_mode<synchronous>, transform_indices = @transform_4, window_bounds = array<i64: 1, 256>}, {pipeline_mode = #tpu.pipeline_mode<synchronous>, transform_indices = @transform_5, window_bounds = array<i64: 256, 128>}, {pipeline_mode = #tpu.pipeline_mode<synchronous>, transform_indices = @transform_6, window_bounds = array<i64: 1, 128>}, {transform_indices = @transform_7, window_bounds = array<i64: 16, 128>}]} {
    %c0 = arith.constant 0 : index
    %c0_0 = arith.constant 0 : index
    %0 = vector.load %arg1[%c0, %c0_0] : memref<16x32xbf16, #tpu.memory_space<vmem>>, vector<16x32xbf16>
    %c0_1 = arith.constant 0 : index
    %c0_2 = arith.constant 0 : index
    %1 = vector.load %arg2[%c0_1, %c0_2] : memref<32x256xbf16, #tpu.memory_space<vmem>>, vector<32x256xbf16>
    %cst = arith.constant dense<0.000000e+00> : vector<16x256xf32>
    %2 = tpu.matmul %0, %1, %cst {dimension_numbers = #tpu.dot_dimension_numbers<[1], [0], [0], [1], [0, 0, 1, 1], [], []>} : vector<16x32xbf16>, vector<32x256xbf16>, vector<16x256xf32> -> vector<16x256xf32>
    %c0_3 = arith.constant 0 : index
    %c0_4 = arith.constant 0 : index
    %3 = vector.load %arg3[%c0_3, %c0_4] : memref<1x256xf32, #tpu.memory_space<vmem>>, vector<1x256xf32>
    %4 = vector.broadcast %3 : vector<1x256xf32> to vector<16x256xf32>
    %5 = arith.addf %2, %4 : vector<16x256xf32>
    %cst_5 = arith.constant 0.000000e+00 : f32
    %6 = vector.broadcast %cst_5 : f32 to vector<16x256xf32>
    %7 = arith.maximumf %5, %6 : vector<16x256xf32>
    %8 = arith.truncf %7 : vector<16x256xf32> to vector<16x256xbf16>
    %c0_6 = arith.constant 0 : index
    %c0_7 = arith.constant 0 : index
    %9 = vector.load %arg4[%c0_6, %c0_7] : memref<256x256xbf16, #tpu.memory_space<vmem>>, vector<256x256xbf16>
    %cst_8 = arith.constant dense<0.000000e+00> : vector<16x256xf32>
    %10 = tpu.matmul %8, %9, %cst_8 {dimension_numbers = #tpu.dot_dimension_numbers<[1], [0], [0], [1], [0, 0, 1, 1], [], []>} : vector<16x256xbf16>, vector<256x256xbf16>, vector<16x256xf32> -> vector<16x256xf32>
    %c0_9 = arith.constant 0 : index
    %c0_10 = arith.constant 0 : index
    %11 = vector.load %arg5[%c0_9, %c0_10] : memref<1x256xf32, #tpu.memory_space<vmem>>, vector<1x256xf32>
    %12 = vector.broadcast %11 : vector<1x256xf32> to vector<16x256xf32>
    %13 = arith.addf %10, %12 : vector<16x256xf32>
    %cst_11 = arith.constant 0.000000e+00 : f32
    %14 = vector.broadcast %cst_11 : f32 to vector<16x256xf32>
    %15 = arith.maximumf %13, %14 : vector<16x256xf32>
    %16 = arith.truncf %15 : vector<16x256xf32> to vector<16x256xbf16>
    %c0_12 = arith.constant 0 : index
    %c0_13 = arith.constant 0 : index
    %17 = vector.load %arg6[%c0_12, %c0_13] : memref<256x128xbf16, #tpu.memory_space<vmem>>, vector<256x128xbf16>
    %cst_14 = arith.constant dense<0.000000e+00> : vector<16x128xf32>
    %18 = tpu.matmul %16, %17, %cst_14 {dimension_numbers = #tpu.dot_dimension_numbers<[1], [0], [0], [1], [0, 0, 1, 1], [], []>} : vector<16x256xbf16>, vector<256x128xbf16>, vector<16x128xf32> -> vector<16x128xf32>
    %c0_15 = arith.constant 0 : index
    %c0_16 = arith.constant 0 : index
    %19 = vector.load %arg7[%c0_15, %c0_16] : memref<1x128xf32, #tpu.memory_space<vmem>>, vector<1x128xf32>
    %20 = vector.broadcast %19 : vector<1x128xf32> to vector<16x128xf32>
    %21 = arith.addf %18, %20 : vector<16x128xf32>
    %c0_17 = arith.constant 0 : index
    %c0_18 = arith.constant 0 : index
    %22 = vector.load %arg8[%c0_17, %c0_18] : memref<16x128xf32, #tpu.memory_space<vmem>>, vector<16x128xf32>
    tpu.vector_store %arg8[%c0_17, %c0_18], %21 {strides = array<i32>} : memref<16x128xf32, #tpu.memory_space<vmem>>, vector<16x128xf32>,
    return
  }
  func.func @transform_0(%arg0: i32) -> (i32, i32) {
    %c0_i32 = arith.constant 0 : i32
    %c0_i32_0 = arith.constant 0 : i32
    return %arg0, %c0_i32 : i32, i32
  }
  func.func @transform_1(%arg0: i32) -> (i32, i32) {
    %c0_i32 = arith.constant 0 : i32
    %c0_i32_0 = arith.constant 0 : i32
    %c0_i32_1 = arith.constant 0 : i32
    return %c0_i32, %c0_i32_0 : i32, i32
  }
  func.func @transform_2(%arg0: i32) -> (i32, i32) {
    %c0_i32 = arith.constant 0 : i32
    %c0_i32_0 = arith.constant 0 : i32
    %c0_i32_1 = arith.constant 0 : i32
    return %c0_i32, %c0_i32_0 : i32, i32
  }
  func.func @transform_3(%arg0: i32) -> (i32, i32) {
    %c0_i32 = arith.constant 0 : i32
    %c0_i32_0 = arith.constant 0 : i32
    %c0_i32_1 = arith.constant 0 : i32
    return %c0_i32, %c0_i32_0 : i32, i32
  }
  func.func @transform_4(%arg0: i32) -> (i32, i32) {
    %c0_i32 = arith.constant 0 : i32
    %c0_i32_0 = arith.constant 0 : i32
    %c0_i32_1 = arith.constant 0 : i32
    return %c0_i32, %c0_i32_0 : i32, i32
  }
  func.func @transform_5(%arg0: i32) -> (i32, i32) {
    %c0_i32 = arith.constant 0 : i32
    %c0_i32_0 = arith.constant 0 : i32
    %c0_i32_1 = arith.constant 0 : i32
    return %c0_i32, %c0_i32_0 : i32, i32
  }
  func.func @transform_6(%arg0: i32) -> (i32, i32) {
    %c0_i32 = arith.constant 0 : i32
    %c0_i32_0 = arith.constant 0 : i32
    %c0_i32_1 = arith.constant 0 : i32
    return %c0_i32, %c0_i32_0 : i32, i32
  }
  func.func @transform_7(%arg0: i32) -> (i32, i32) {
    %c0_i32 = arith.constant 0 : i32
    %c0_i32_0 = arith.constant 0 : i32
    return %arg0, %c0_i32 : i32, i32
  }
}

</mosaic_0001>

<llo_original>
// kernel: tpu_custom_call.1
$region0: #{tpu_custom_call.1}
  #allocation0 [shape = 'u32[]', space=smem, size = 0x4, offset = 0x4, fixed_abs, tag = 'smem constant byte address 0x4 - core index']
  #allocation1 [shape = 'u32[72,128]{1,0:T(1,128)}', space=vmem, size = 0x9000, scoped, tag = 'internal scratch']
  %s0 = inlined_call_operand.hbm [shape: bf16[32,32], index: 0, kind: input, shape index: {}]
  %s1 = inlined_call_operand.hbm [shape: bf16[32,256], index: 1, kind: input, shape index: {}]
  %s2 = inlined_call_operand.hbm [shape: f32[1,256], index: 2, kind: input, shape index: {}]
  %s3 = inlined_call_operand.hbm [shape: bf16[256,256], index: 3, kind: input, shape index: {}]
  %s4 = inlined_call_operand.vmem [shape: f32[1,256], index: 4, kind: input, shape index: {}]
  %s5 = inlined_call_operand.hbm [shape: bf16[256,128], index: 5, kind: input, shape index: {}]
  %s6 = inlined_call_operand.vmem [shape: f32[1,128], index: 6, kind: input, shape index: {}]
  %s7 = inlined_call_operand.hbm [shape: f32[32,128], index: 7, kind: output, shape index: {}]
  %s8 = sld [smem:[#allocation0]]
  $region81: #{tpu_custom_call.1} parent=0
    _
  %s10 = ssub.s32 1, %s8
  %s11 = scalar_select 0, %s10, %s8
  $region1: #{tpu_custom_call.1} parent=0
    #allocation2 [shape = 'u8[8192]{0}', space=vmem, size = 0x2000, scoped, tag = 'input window, operand 0']
    #allocation3 [shape = 's32[2]{0}', space=sflag, size = 0x8, scoped, tag = 'scoped memory for tpu_custom_call.1']
    #allocation4 [shape = 's32[2]{0}', space=sflag, size = 0x8, scoped, tag = 'scoped memory for tpu_custom_call.1']
    #allocation5 [shape = 'u8[16384]{0}', space=vmem, size = 0x4000, scoped, tag = 'input window, operand 1, single buffered']
    #allocation6 [shape = 's32[1]{0}', space=sflag, size = 0x4, scoped, tag = 'scoped memory for tpu_custom_call.1']
    #allocation7 [shape = 'u8[1024]{0}', space=vmem, size = 0x400, scoped, tag = 'input window, operand 2, single buffered']
    #allocation8 [shape = 'u8[131072]{0}', space=vmem, size = 0x20000, scoped, tag = 'input window, operand 3, single buffered']
    #allocation9 [shape = 's32[1]{0}', space=sflag, size = 0x4, scoped, tag = 'scoped memory for tpu_custom_call.1']
    #allocation10 [shape = 'u8[65536]{0}', space=vmem, size = 0x10000, scoped, tag = 'input window, operand 5, single buffered']
    #allocation11 [shape = 'u8[16384]{0}', space=vmem, size = 0x4000, scoped, tag = 'output window, operand 0']
    %12 = vsyncpa [#allocation3], 0
    %s13 = scalar_lea.sflag [#allocation3], 1
    %14 = vsyncpa %s13, 0
    %15 = vsyncpa [#allocation6], 0
    %16 = vsyncpa [#allocation9], 0
    %17 = vsyncpa [#allocation4], 0
    %s18 = scalar_lea.sflag [#allocation4], 1
    %19 = vsyncpa %s18, 0
    loop: start=0, step=1, limit=4
    $region2: #{tpu_custom_call.1} parent=1 // loop_pre_header
      _
    $region3: #{tpu_custom_call.1} parent=1 // loop_header
      %s21 = sphi 0, %s25
      %p22 = scmp.ge.s32.totalorder %s21, 4
      %s31 = sphi 0, %s33
      %s34 = sphi 0, %s31
      %s35 = sphi 0, %s34
      %s51 = sphi 0, %s35
      %s55 = sphi 0, %s55
      %s57 = sphi 0, %s55
      %s58 = sphi 0, %s57
      %s72 = sphi 0, %s58
      %s76 = sphi 0, %s76
      %s78 = sphi 0, %s76
      %s79 = sphi 0, %s78
      %s93 = sphi 0, %s79
      %s97 = sphi 0, %s97
      %s99 = sphi 0, %s97
      %s100 = sphi 0, %s99
      %s114 = sphi 0, %s100
      %s118 = sphi 0, %s118
      %s120 = sphi 0, %s118
      %s121 = sphi 0, %s120
      %s135 = sphi 0, %s121
      %s139 = sphi 0, %s139
      %s141 = sphi 0, %s139
      %s142 = sphi 0, %s141
      %s156 = sphi 0, %s142
      %s160 = sphi 0, %s160
      %s162 = sphi 0, %s160
      %s163 = sphi 0, %s162
      %s177 = sphi 0, %s163
      %s183 = sphi 0, %s185
      %s186 = sphi 0, %s183
      %s187 = sphi 0, %s186
      %s203 = sphi 0, %s187
    $region4: #{tpu_custom_call.1} parent=1 // loop_header_branch
      %24 = sbr.rel (%p22) target = $region8
    $region5: #{tpu_custom_call.1} parent=1 // loop_body
      %s26 = ssub.s32 %s21, 1
      %s27 = ssub.s32 %s21, 2
      %s28 = sadd.s32 %s21, 1
      %s29 = ssub.s32 %s21, %s28
      %p30 = scmp.eq.s32.totalorder %s29, 0
      %s32 = sadd.s32 %s31, 1
      %s33 = scalar_select %p30, %s31, %s32
      %p36 = pneg %p30
      %p37 = scmp.eq.s32.totalorder %s21, 1
      %p38 = por %p36, %p37
      %p39 = scmp.ne.s32.totalorder %s31, %s34
      %p40 = scmp.eq.s32.totalorder %s21, 0
      %p41 = por %p39, %p40
      %p42 = scmp.ne.s32.totalorder %s31, %s34
      %p43 = scmp.eq.s32.totalorder %s26, 1
      %p44 = por %p42, %p43
      %p45 = scmp.ne.s32.totalorder %s34, %s35
      %p46 = scmp.eq.s32.totalorder %s26, 0
      %p47 = por %p45, %p46
      %p48 = scmp.ne.s32.totalorder %s34, %s35
      %p49 = scmp.eq.s32.totalorder %s27, 1
      %p50 = por %p48, %p49
      %p52 = scmp.ne.s32.totalorder %s35, %s51
      %p53 = scmp.eq.s32.totalorder %s27, 0
      %p54 = por %p52, %p53
      %s56 = sadd.s32 %s55, 1
      %p59 = scmp.eq.s32.totalorder %s21, 1
      %p60 = scmp.ne.s32.totalorder %s55, %s57
      %p61 = scmp.eq.s32.totalorder %s21, 0
      %p62 = por %p60, %p61
      %p63 = scmp.ne.s32.totalorder %s55, %s57
      %p64 = scmp.eq.s32.totalorder %s26, 1
      %p65 = por %p63, %p64
      %p66 = scmp.ne.s32.totalorder %s57, %s58
      %p67 = scmp.eq.s32.totalorder %s26, 0
      %p68 = por %p66, %p67
      %p69 = scmp.ne.s32.totalorder %s57, %s58
      %p70 = scmp.eq.s32.totalorder %s27, 1
      %p71 = por %p69, %p70
      %p73 = scmp.ne.s32.totalorder %s58, %s72
      %p74 = scmp.eq.s32.totalorder %s27, 0
      %p75 = por %p73, %p74
      %s77 = sadd.s32 %s76, 1
      %p80 = scmp.eq.s32.totalorder %s21, 1
      %p81 = scmp.ne.s32.totalorder %s76, %s78
      %p82 = scmp.eq.s32.totalorder %s21, 0
      %p83 = por %p81, %p82
      %p84 = scmp.ne.s32.totalorder %s76, %s78
      %p85 = scmp.eq.s32.totalorder %s26, 1
      %p86 = por %p84, %p85
      %p87 = scmp.ne.s32.totalorder %s78, %s79
      %p88 = scmp.eq.s32.totalorder %s26, 0
      %p89 = por %p87, %p88
      %p90 = scmp.ne.s32.totalorder %s78, %s79
      %p91 = scmp.eq.s32.totalorder %s27, 1
      %p92 = por %p90, %p91
      %p94 = scmp.ne.s32.totalorder %s79, %s93
      %p95 = scmp.eq.s32.totalorder %s27, 0
      %p96 = por %p94, %p95
      %s98 = sadd.s32 %s97, 1
      %p101 = scmp.eq.s32.totalorder %s21, 1
      %p102 = scmp.ne.s32.totalorder %s97, %s99
      %p103 = scmp.eq.s32.totalorder %s21, 0
      %p104 = por %p102, %p103
      %p105 = scmp.ne.s32.totalorder %s97, %s99
      %p106 = scmp.eq.s32.totalorder %s26, 1
      %p107 = por %p105, %p106
      %p108 = scmp.ne.s32.totalorder %s99, %s100
      %p109 = scmp.eq.s32.totalorder %s26, 0
      %p110 = por %p108, %p109
      %p111 = scmp.ne.s32.totalorder %s99, %s100
      %p112 = scmp.eq.s32.totalorder %s27, 1
      %p113 = por %p111, %p112
      %p115 = scmp.ne.s32.totalorder %s100, %s114
      %p116 = scmp.eq.s32.totalorder %s27, 0
      %p117 = por %p115, %p116
      %s119 = sadd.s32 %s118, 1
      %p122 = scmp.eq.s32.totalorder %s21, 1
      %p123 = scmp.ne.s32.totalorder %s118, %s120
      %p124 = scmp.eq.s32.totalorder %s21, 0
      %p125 = por %p123, %p124
      %p126 = scmp.ne.s32.totalorder %s118, %s120
      %p127 = scmp.eq.s32.totalorder %s26, 1
      %p128 = por %p126, %p127
      %p129 = scmp.ne.s32.totalorder %s120, %s121
      %p130 = scmp.eq.s32.totalorder %s26, 0
      %p131 = por %p129, %p130
      %p132 = scmp.ne.s32.totalorder %s120, %s121
      %p133 = scmp.eq.s32.totalorder %s27, 1
      %p134 = por %p132, %p133
      %p136 = scmp.ne.s32.totalorder %s121, %s135
      %p137 = scmp.eq.s32.totalorder %s27, 0
      %p138 = por %p136, %p137
      %s140 = sadd.s32 %s139, 1
      %p143 = scmp.eq.s32.totalorder %s21, 1
      %p144 = scmp.ne.s32.totalorder %s139, %s141
      %p145 = scmp.eq.s32.totalorder %s21, 0
      %p146 = por %p144, %p145
      %p147 = scmp.ne.s32.totalorder %s139, %s141
      %p148 = scmp.eq.s32.totalorder %s26, 1
      %p149 = por %p147, %p148
      %p150 = scmp.ne.s32.totalorder %s141, %s142
      %p151 = scmp.eq.s32.totalorder %s26, 0
      %p152 = por %p150, %p151
      %p153 = scmp.ne.s32.totalorder %s141, %s142
      %p154 = scmp.eq.s32.totalorder %s27, 1
      %p155 = por %p153, %p154
      %p157 = scmp.ne.s32.totalorder %s142, %s156
      %p158 = scmp.eq.s32.totalorder %s27, 0
      %p159 = por %p157, %p158
      %s161 = sadd.s32 %s160, 1
      %p164 = scmp.eq.s32.totalorder %s21, 1
      %p165 = scmp.ne.s32.totalorder %s160, %s162
      %p166 = scmp.eq.s32.totalorder %s21, 0
      %p167 = por %p165, %p166
      %p168 = scmp.ne.s32.totalorder %s160, %s162
      %p169 = scmp.eq.s32.totalorder %s26, 1
      %p170 = por %p168, %p169
      %p171 = scmp.ne.s32.totalorder %s162, %s163
      %p172 = scmp.eq.s32.totalorder %s26, 0
      %p173 = por %p171, %p172
      %p174 = scmp.ne.s32.totalorder %s162, %s163
      %p175 = scmp.eq.s32.totalorder %s27, 1
      %p176 = por %p174, %p175
      %p178 = scmp.ne.s32.totalorder %s163, %s177
      %p179 = scmp.eq.s32.totalorder %s27, 0
      %p180 = por %p178, %p179
      %s181 = ssub.s32 %s21, %s28
      %p182 = scmp.eq.s32.totalorder %s181, 0
      %s184 = sadd.s32 %s183, 1
      %s185 = scalar_select %p182, %s183, %s184
      %p188 = pneg %p182
      %p189 = scmp.eq.s32.totalorder %s21, 1
      %p190 = por %p188, %p189
      %p191 = scmp.ne.s32.totalorder %s183, %s186
      %p192 = scmp.eq.s32.totalorder %s21, 0
      %p193 = por %p191, %p192
      %p194 = scmp.ne.s32.totalorder %s183, %s186
      %p195 = scmp.eq.s32.totalorder %s26, 1
      %p196 = por %p194, %p195
      %p197 = scmp.ne.s32.totalorder %s186, %s187
      %p198 = scmp.eq.s32.totalorder %s26, 0
      %p199 = por %p197, %p198
      %p200 = scmp.ne.s32.totalorder %s186, %s187
      %p201 = scmp.eq.s32.totalorder %s27, 1
      %p202 = por %p200, %p201
      %p204 = scmp.ne.s32.totalorder %s187, %s203
      %p205 = scmp.eq.s32.totalorder %s27, 0
      %p206 = por %p204, %p205
      %p207 = scmp.le.s32.totalorder 1, %s21
      %p208 = scmp.lt.s32.totalorder %s21, 3
      %p209 = pnand %p207, %p208
      %p210 = pneg %p209
      // Predicated region
      $region9: #{tpu_custom_call.1} parent=5 // pred_check
        _
      $region10: #{tpu_custom_call.1} parent=5 // pred_check_branch
        %212 = sbr.rel (%p209) target = $region12
      $region11: #{tpu_custom_call.1} parent=5 // pred_region
        %s213 = ssub.s32 %s21, 1
        // Predicated region
        $region13: #{tpu_custom_call.1} parent=11 // pred_check
          %p214 = pneg %p68
        $region14: #{tpu_custom_call.1} parent=11 // pred_check_branch
          %216 = sbr.rel (%p214) target = $region16
        $region15: #{tpu_custom_call.1} parent=11 // pred_region
          %218 = vsyncadd [#allocation6], 0
          %s219 = sshll.u32 %s1, 4
          %s220 = int_to_ptr.hbm [resolvable:$true] %s219
          %s221 = sshll.u32 [#allocation5], 4
          %s222 = int_to_ptr.vmem [resolvable:$true] %s221
          %227 = dma.hbm_to_vmem [thread:$0]  %s220, 512, %s222, [#allocation6], 128, 128, 8
        $region16: #{tpu_custom_call.1} parent=11 // pred_fallthru
          _
        // Predicated region
        $region17: #{tpu_custom_call.1} parent=11 // pred_check
          %p228 = pneg %p89
        $region18: #{tpu_custom_call.1} parent=11 // pred_check_branch
          %230 = sbr.rel (%p228) target = $region20
        $region19: #{tpu_custom_call.1} parent=11 // pred_region
          %232 = vsyncadd [#allocation6], 0
          %s234 = sshll.u32 %s2, 4
          %s235 = int_to_ptr.hbm [resolvable:$true] %s234
          %s236 = sshll.u32 [#allocation7], 4
          %s237 = int_to_ptr.vmem [resolvable:$true] %s236
          %239 = dma.hbm_to_vmem [thread:$0]  %s235, 32, %s237, [#allocation6]
        $region20: #{tpu_custom_call.1} parent=11 // pred_fallthru
          _
        // Predicated region
        $region21: #{tpu_custom_call.1} parent=11 // pred_check
          %p240 = pneg %p110
        $region22: #{tpu_custom_call.1} parent=11 // pred_check_branch
          %242 = sbr.rel (%p240) target = $region24
        $region23: #{tpu_custom_call.1} parent=11 // pred_region
          %244 = vsyncadd [#allocation9], 0
          %s245 = sshll.u32 %s3, 4
          %s246 = int_to_ptr.hbm [resolvable:$true] %s245
          %s247 = sshll.u32 [#allocation8], 4
          %s248 = int_to_ptr.vmem [resolvable:$true] %s247
          %253 = dma.hbm_to_vmem [thread:$0]  %s246, 4096, %s248, [#allocation9], 128, 128, 8
        $region24: #{tpu_custom_call.1} parent=11 // pred_fallthru
          _
        // Predicated region
        $region25: #{tpu_custom_call.1} parent=11 // pred_check
          %p254 = pneg %p131
        $region26: #{tpu_custom_call.1} parent=11 // pred_check_branch
          %256 = sbr.rel (%p254) target = $region28
        $region27: #{tpu_custom_call.1} parent=11 // pred_region
          _
        $region28: #{tpu_custom_call.1} parent=11 // pred_fallthru
          _
        // Predicated region
        $region29: #{tpu_custom_call.1} parent=11 // pred_check
          %p257 = pneg %p152
        $region30: #{tpu_custom_call.1} parent=11 // pred_check_branch
          %259 = sbr.rel (%p257) target = $region32
        $region31: #{tpu_custom_call.1} parent=11 // pred_region
          %261 = vsyncadd [#allocation9], 0
          %s262 = sshll.u32 %s5, 4
          %s263 = int_to_ptr.hbm [resolvable:$true] %s262
          %s264 = sshll.u32 [#allocation10], 4
          %s265 = int_to_ptr.vmem [resolvable:$true] %s264
          %270 = dma.hbm_to_vmem [thread:$0]  %s263, 2048, %s265, [#allocation9], 64, 64, 4
        $region32: #{tpu_custom_call.1} parent=11 // pred_fallthru
          _
        // Predicated region
        $region33: #{tpu_custom_call.1} parent=11 // pred_check
          %p271 = pneg %p173
        $region34: #{tpu_custom_call.1} parent=11 // pred_check_branch
          %273 = sbr.rel (%p271) target = $region36
        $region35: #{tpu_custom_call.1} parent=11 // pred_region
          _
        $region36: #{tpu_custom_call.1} parent=11 // pred_fallthru
          _
      $region12: #{tpu_custom_call.1} parent=5 // pred_fallthru
        _
      %p274 = scmp.lt.s32.totalorder %s21, 2
      // Predicated region
      $region37: #{tpu_custom_call.1} parent=5 // pred_check
        %p275 = pneg %p274
      $region38: #{tpu_custom_call.1} parent=5 // pred_check_branch
        %277 = sbr.rel (%p275) target = $region40
      $region39: #{tpu_custom_call.1} parent=5 // pred_region
        // Predicated region
        $region41: #{tpu_custom_call.1} parent=39 // pred_check
          %p278 = pneg %p41
        $region42: #{tpu_custom_call.1} parent=39 // pred_check_branch
          %280 = sbr.rel (%p278) target = $region44
        $region43: #{tpu_custom_call.1} parent=39 // pred_region
          %s281 = sand.u32 %s31, 1
          %s282 = scalar_lea.sflag [#allocation3], %s281
          %s283 = sand.u32 %s31, 1
          %s284 = smul.addr %s283, 8
          %s285 = scalar_lea.vmem [#allocation2], %s284
          %s286 = smul.u32 2, %s21
          %288 = vsyncadd %s282, 0
          %s289 = smul.addr %s286, 4
          %s290 = scalar_lea.hbm %s0, %s289
          %s291 = sshll.u32 %s290, 4
          %s292 = int_to_ptr.hbm [resolvable:$true] %s291
          %s293 = sshll.u32 %s285, 4
          %s294 = int_to_ptr.vmem [resolvable:$true] %s293
          %299 = dma.hbm_to_vmem [thread:$0]  %s292, 128, %s294, %s282, 64, 64, 4
        $region44: #{tpu_custom_call.1} parent=39 // pred_fallthru
          _
      $region40: #{tpu_custom_call.1} parent=5 // pred_fallthru
        _
      %p300 = scmp.le.s32.totalorder 1, %s21
      %p301 = scmp.lt.s32.totalorder %s21, 3
      %p302 = pnand %p300, %p301
      %p303 = pneg %p302
      // Predicated region
      $region45: #{tpu_custom_call.1} parent=5 // pred_check
        _
      $region46: #{tpu_custom_call.1} parent=5 // pred_check_branch
        %305 = sbr.rel (%p302) target = $region48
      $region47: #{tpu_custom_call.1} parent=5 // pred_region
        %s306 = ssub.s32 %s21, 1
        %s307 = sand.u32 %s34, 1
        %s308 = scalar_lea.sflag [#allocation3], %s307
        %s309 = sand.u32 %s34, 1
        %s310 = smul.addr %s309, 8
        %s311 = scalar_lea.vmem [#allocation2], %s310
        // Predicated region
        $region49: #{tpu_custom_call.1} parent=47 // pred_check
          %p312 = pneg %p47
        $region50: #{tpu_custom_call.1} parent=47 // pred_check_branch
          %314 = sbr.rel (%p312) target = $region52
        $region51: #{tpu_custom_call.1} parent=47 // pred_region
          %316 = dma.done %s308, 128
        $region52: #{tpu_custom_call.1} parent=47 // pred_fallthru
          _
        // Predicated region
        $region53: #{tpu_custom_call.1} parent=47 // pred_check
          %p317 = pneg %p68
        $region54: #{tpu_custom_call.1} parent=47 // pred_check_branch
          %319 = sbr.rel (%p317) target = $region56
        $region55: #{tpu_custom_call.1} parent=47 // pred_region
          %321 = dma.done [#allocation6], 512
        $region56: #{tpu_custom_call.1} parent=47 // pred_fallthru
          _
        // Predicated region
        $region57: #{tpu_custom_call.1} parent=47 // pred_check
          %p322 = pneg %p89
        $region58: #{tpu_custom_call.1} parent=47 // pred_check_branch
          %324 = sbr.rel (%p322) target = $region60
        $region59: #{tpu_custom_call.1} parent=47 // pred_region
          %326 = dma.done [#allocation6], 32
        $region60: #{tpu_custom_call.1} parent=47 // pred_fallthru
          _
        // Predicated region
        $region61: #{tpu_custom_call.1} parent=47 // pred_check
          %p327 = pneg %p110
        $region62: #{tpu_custom_call.1} parent=47 // pred_check_branch
          %329 = sbr.rel (%p327) target = $region64
        $region63: #{tpu_custom_call.1} parent=47 // pred_region
          %331 = dma.done [#allocation9], 4096
        $region64: #{tpu_custom_call.1} parent=47 // pred_fallthru
          _
        // Predicated region
        $region65: #{tpu_custom_call.1} parent=47 // pred_check
          %p332 = pneg %p152
        $region66: #{tpu_custom_call.1} parent=47 // pred_check_branch
          %334 = sbr.rel (%p332) target = $region68
        $region67: #{tpu_custom_call.1} parent=47 // pred_region
          %336 = dma.done [#allocation9], 2048
        $region68: #{tpu_custom_call.1} parent=47 // pred_fallthru
          _
        %s337 = sand.u32 %s34, 1
        %s338 = scalar_lea.sflag [#allocation3], %s337
        %s339 = sand.u32 %s34, 1
        %s340 = smul.addr %s339, 8
        %s341 = scalar_lea.vmem [#allocation2], %s340
        %p342 = pneg %p47
        %p343 = pneg %p44
        %p344 = pneg %p68
        %p345 = pneg %p65
        %p346 = pneg %p89
        %p347 = pneg %p86
        %p348 = pneg %p110
        %p349 = pneg %p107
        %p350 = pneg %p131
        %p351 = pneg %p128
        %p352 = pneg %p152
        %p353 = pneg %p149
        %p354 = pneg %p173
        %p355 = pneg %p170
        %p356 = pneg %p199
        %p357 = pneg %p196
        %s358 = sand.u32 %s186, 1
        %s359 = scalar_lea.sflag [#allocation4], %s358
        %s360 = sand.u32 %s186, 1
        %s361 = smul.addr %s360, 16
        %s362 = scalar_lea.vmem [#allocation11], %s361
        %s363 = smul.u32 2, %s26
        %s364 = smul.u32 2, %s26
        %v366 = vld [vmem:[%s311] sm:$0xf]
        %v367 = vld [vmem:[%s311 + $0x4] sm:$0xf]
        %v368 = vld [vmem:[#allocation5] sm:$0xff]
        %v369 = vld [vmem:[#allocation5 + $0x8] sm:$0xff]
        %v370 = vld [vmem:[#allocation5 + $0x10] sm:$0xff]
        %v371 = vld [vmem:[#allocation5 + $0x18] sm:$0xff]
        %v372 = vld [vmem:[#allocation7] sm:$0x3]
        %v374 = vperm.slane %v372, 0
        %v375 = vperm.slane %v372, 1
        %v380 = vunpack.c.l.b16 %v366
        %v381 = vunpack.c.l.b16 %v367
        %v382 = vpack.c.b16 %v381, %v380
        %v387 = vunpack.c.l.b16 %v368
        %v388 = vunpack.c.h.b16 %v368
        %v389 = vunpack.c.l.b16 %v369
        %v390 = vunpack.c.h.b16 %v369
        %v391 = vunpack.c.l.b16 %v370
        %v392 = vunpack.c.h.b16 %v370
        %v393 = vunpack.c.l.b16 %v371
        %v394 = vunpack.c.h.b16 %v371
        %v395 = vpack.c.b16 %v389, %v387
        %v396 = vpack.c.b16 %v390, %v388
        %v397 = vpack.c.b16 %v393, %v391
        %v398 = vpack.c.b16 %v394, %v392
        %vm403 = vcmask 261120
        %v405 = vsel %vm403, %v382, 0
        %407 = vmatpush.bf16.msra.mxu0 0
        %408 = vmatpush.bf16.msra.mxu0 0
        %409 = vmatpush.bf16.msra.mxu0 0
        %410 = vmatpush.bf16.msra.mxu0 0
        %411 = vmatpush.bf16.msra.mxu0 0
        %412 = vmatpush.bf16.msra.mxu0 0
        %413 = vmatpush.bf16.msra.mxu0 %v397
        %414 = vmatpush.bf16.msra.mxu0 %v395
        %415 = vmatmul.bf16.gmra.mxu0 %v405
        %v416 = vpop.f32.mrf.mxu0
        %v417 = vadd.f32 %v374, %v416
        %v418 = vpop.f32.mrf.mxu0
        %v419 = vadd.f32 %v374, %v418
        %420 = vdwg.mxu0
        %421 = vmatpush.bf16.msra.mxu0 0
        %422 = vmatpush.bf16.msra.mxu0 0
        %423 = vmatpush.bf16.msra.mxu0 0
        %424 = vmatpush.bf16.msra.mxu0 0
        %425 = vmatpush.bf16.msra.mxu0 0
        %426 = vmatpush.bf16.msra.mxu0 0
        %427 = vmatpush.bf16.msra.mxu0 %v398
        %428 = vmatpush.bf16.msra.mxu0 %v396
        %429 = vmatmul.bf16.gmra.mxu0 %v405
        %v430 = vpop.f32.mrf.mxu0
        %v431 = vadd.f32 %v375, %v430
        %v432 = vpop.f32.mrf.mxu0
        %v433 = vadd.f32 %v375, %v432
        %434 = vdwg.mxu0
        %v435 = vmax.f32 %v417, 0.0
        %v436 = vmax.f32 %v431, 0.0
        %v437 = vmax.f32 %v419, 0.0
        %v438 = vmax.f32 %v433, 0.0
        %v439 = vpack.c.bf16 %v437, %v435
        %v440 = vpack.c.bf16 %v438, %v436
        %v441 = vld [vmem:[#allocation8] sm:$0xff]
        %v442 = vld [vmem:[#allocation8 + $0x8] sm:$0xff]
        %v443 = vld [vmem:[#allocation8 + $0x10] sm:$0xff]
        %v444 = vld [vmem:[#allocation8 + $0x18] sm:$0xff]
        %v445 = vld [vmem:[#allocation8 + $0x20] sm:$0xff]
        %v446 = vld [vmem:[#allocation8 + $0x28] sm:$0xff]
        %v447 = vld [vmem:[#allocation8 + $0x30] sm:$0xff]
        %v448 = vld [vmem:[#allocation8 + $0x38] sm:$0xff]
        %v449 = vld [vmem:[#allocation8 + $0x40] sm:$0xff]
        %v450 = vld [vmem:[#allocation8 + $0x48] sm:$0xff]
        %v451 = vld [vmem:[#allocation8 + $0x50] sm:$0xff]
        %v452 = vld [vmem:[#allocation8 + $0x58] sm:$0xff]
        %v453 = vld [vmem:[#allocation8 + $0x60] sm:$0xff]
        %v454 = vld [vmem:[#allocation8 + $0x68] sm:$0xff]
        %v455 = vld [vmem:[#allocation8 + $0x70] sm:$0xff]
        %v456 = vld [vmem:[#allocation8 + $0x78] sm:$0xff]
        %v457 = vld [vmem:[#allocation8 + $0x80] sm:$0xff]
        %v458 = vld [vmem:[#allocation8 + $0x88] sm:$0xff]
        %v459 = vld [vmem:[#allocation8 + $0x90] sm:$0xff]
        %v460 = vld [vmem:[#allocation8 + $0x98] sm:$0xff]
        %v461 = vld [vmem:[#allocation8 + $0xa0] sm:$0xff]
        %v462 = vld [vmem:[#allocation8 + $0xa8] sm:$0xff]
        %v463 = vld [vmem:[#allocation8 + $0xb0] sm:$0xff]
        %v464 = vld [vmem:[#allocation8 + $0xb8] sm:$0xff]
        %v465 = vld [vmem:[#allocation8 + $0xc0] sm:$0xff]
        %v466 = vld [vmem:[#allocation8 + $0xc8] sm:$0xff]
        %v467 = vld [vmem:[#allocation8 + $0xd0] sm:$0xff]
        %v468 = vld [vmem:[#allocation8 + $0xd8] sm:$0xff]
        %v469 = vld [vmem:[#allocation8 + $0xe0] sm:$0xff]
        %v470 = vld [vmem:[#allocation8 + $0xe8] sm:$0xff]
        %v471 = vld [vmem:[#allocation8 + $0xf0] sm:$0xff]
        %v472 = vld [vmem:[#allocation8 + $0xf8] sm:$0xff]
        %v473 = vld [vmem:[%s4] sm:$0x3]
        %v475 = vperm.slane %v473, 0
        %v476 = vperm.slane %v473, 1
        %v511 = vunpack.c.l.b16 %v441
        %v512 = vunpack.c.h.b16 %v441
        %v513 = vunpack.c.l.b16 %v442
        %v514 = vunpack.c.h.b16 %v442
        %v515 = vunpack.c.l.b16 %v443
        %v516 = vunpack.c.h.b16 %v443
        %v517 = vunpack.c.l.b16 %v444
        %v518 = vunpack.c.h.b16 %v444
        %v519 = vunpack.c.l.b16 %v445
        %v520 = vunpack.c.h.b16 %v445
        %v521 = vunpack.c.l.b16 %v446
        %v522 = vunpack.c.h.b16 %v446
        %v523 = vunpack.c.l.b16 %v447
        %v524 = vunpack.c.h.b16 %v447
        %v525 = vunpack.c.l.b16 %v448
        %v526 = vunpack.c.h.b16 %v448
        %v527 = vunpack.c.l.b16 %v449
        %v528 = vunpack.c.h.b16 %v449
        %v529 = vunpack.c.l.b16 %v450
        %v530 = vunpack.c.h.b16 %v450
        %v531 = vunpack.c.l.b16 %v451
        %v532 = vunpack.c.h.b16 %v451
        %v533 = vunpack.c.l.b16 %v452
        %v534 = vunpack.c.h.b16 %v452
        %v535 = vunpack.c.l.b16 %v453
        %v536 = vunpack.c.h.b16 %v453
        %v537 = vunpack.c.l.b16 %v454
        %v538 = vunpack.c.h.b16 %v454
        %v539 = vunpack.c.l.b16 %v455
        %v540 = vunpack.c.h.b16 %v455
        %v541 = vunpack.c.l.b16 %v456
        %v542 = vunpack.c.h.b16 %v456
        %v543 = vunpack.c.l.b16 %v457
        %v544 = vunpack.c.h.b16 %v457
        %v545 = vunpack.c.l.b16 %v458
        %v546 = vunpack.c.h.b16 %v458
        %v547 = vunpack.c.l.b16 %v459
        %v548 = vunpack.c.h.b16 %v459
        %v549 = vunpack.c.l.b16 %v460
        %v550 = vunpack.c.h.b16 %v460
        %v551 = vunpack.c.l.b16 %v461
        %v552 = vunpack.c.h.b16 %v461
        %v553 = vunpack.c.l.b16 %v462
        %v554 = vunpack.c.h.b16 %v462
        %v555 = vunpack.c.l.b16 %v463
        %v556 = vunpack.c.h.b16 %v463
        %v557 = vunpack.c.l.b16 %v464
        %v558 = vunpack.c.h.b16 %v464
        %v559 = vunpack.c.l.b16 %v465
        %v560 = vunpack.c.h.b16 %v465
        %v561 = vunpack.c.l.b16 %v466
        %v562 = vunpack.c.h.b16 %v466
        %v563 = vunpack.c.l.b16 %v467
        %v564 = vunpack.c.h.b16 %v467
        %v565 = vunpack.c.l.b16 %v468
        %v566 = vunpack.c.h.b16 %v468
        %v567 = vunpack.c.l.b16 %v469
        %v568 = vunpack.c.h.b16 %v469
        %v569 = vunpack.c.l.b16 %v470
        %v570 = vunpack.c.h.b16 %v470
        %v571 = vunpack.c.l.b16 %v471
        %v572 = vunpack.c.h.b16 %v471
        %v573 = vunpack.c.l.b16 %v472
        %v574 = vunpack.c.h.b16 %v472
        %v575 = vpack.c.b16 %v513, %v511
        %v576 = vpack.c.b16 %v514, %v512
        %v577 = vpack.c.b16 %v517, %v515
        %v578 = vpack.c.b16 %v518, %v516
        %v579 = vpack.c.b16 %v521, %v519
        %v580 = vpack.c.b16 %v522, %v520
        %v581 = vpack.c.b16 %v525, %v523
        %v582 = vpack.c.b16 %v526, %v524
        %v583 = vpack.c.b16 %v529, %v527
        %v584 = vpack.c.b16 %v530, %v528
        %v585 = vpack.c.b16 %v533, %v531
        %v586 = vpack.c.b16 %v534, %v532
        %v587 = vpack.c.b16 %v537, %v535
        %v588 = vpack.c.b16 %v538, %v536
        %v589 = vpack.c.b16 %v541, %v539
        %v590 = vpack.c.b16 %v542, %v540
        %v591 = vpack.c.b16 %v545, %v543
        %v592 = vpack.c.b16 %v546, %v544
        %v593 = vpack.c.b16 %v549, %v547
        %v594 = vpack.c.b16 %v550, %v548
        %v595 = vpack.c.b16 %v553, %v551
        %v596 = vpack.c.b16 %v554, %v552
        %v597 = vpack.c.b16 %v557, %v555
        %v598 = vpack.c.b16 %v558, %v556
        %v599 = vpack.c.b16 %v561, %v559
        %v600 = vpack.c.b16 %v562, %v560
        %v601 = vpack.c.b16 %v565, %v563
        %v602 = vpack.c.b16 %v566, %v564
        %v603 = vpack.c.b16 %v569, %v567
        %v604 = vpack.c.b16 %v570, %v568
        %v605 = vpack.c.b16 %v573, %v571
        %v606 = vpack.c.b16 %v574, %v572
        %639 = vmatpush.bf16.msra.mxu0 %v589
        %640 = vmatpush.bf16.msra.mxu0 %v587
        %641 = vmatpush.bf16.msra.mxu0 %v585
        %642 = vmatpush.bf16.msra.mxu0 %v583
        %643 = vmatpush.bf16.msra.mxu0 %v581
        %644 = vmatpush.bf16.msra.mxu0 %v579
        %645 = vmatpush.bf16.msra.mxu0 %v577
        %646 = vmatpush.bf16.msra.mxu0 %v575
        %647 = vmatmul.bf16.gmra.mxu0 %v439
        %v648 = vpop.f32.mrf.mxu0
        %v649 = vadd.f32 %v475, %v648
        %v650 = vpop.f32.mrf.mxu0
        %v651 = vadd.f32 %v475, %v650
        %652 = vdwg.mxu0
        %653 = vmatpush.bf16.msra.mxu0 %v605
        %654 = vmatpush.bf16.msra.mxu0 %v603
        %655 = vmatpush.bf16.msra.mxu0 %v601
        %656 = vmatpush.bf16.msra.mxu0 %v599
        %657 = vmatpush.bf16.msra.mxu0 %v597
        %658 = vmatpush.bf16.msra.mxu0 %v595
        %659 = vmatpush.bf16.msra.mxu0 %v593
        %660 = vmatpush.bf16.msra.mxu0 %v591
        %661 = vmatmul.bf16.gmra.mxu0 %v440
        %v662 = vpop.f32.mrf.mxu0
        %v663 = vadd.f32 %v649, %v662
        %v664 = vpop.f32.mrf.mxu0
        %v665 = vadd.f32 %v651, %v664
        %666 = vdwg.mxu0
        %667 = vmatpush.bf16.msra.mxu0 %v590
        %668 = vmatpush.bf16.msra.mxu0 %v588
        %669 = vmatpush.bf16.msra.mxu0 %v586
        %670 = vmatpush.bf16.msra.mxu0 %v584
        %671 = vmatpush.bf16.msra.mxu0 %v582
        %672 = vmatpush.bf16.msra.mxu0 %v580
        %673 = vmatpush.bf16.msra.mxu0 %v578
        %674 = vmatpush.bf16.msra.mxu0 %v576
        %675 = vmatmul.bf16.gmra.mxu0 %v439
        %v676 = vpop.f32.mrf.mxu0
        %v677 = vadd.f32 %v476, %v676
        %v678 = vpop.f32.mrf.mxu0
        %v679 = vadd.f32 %v476, %v678
        %680 = vdwg.mxu0
        %681 = vmatpush.bf16.msra.mxu0 %v606
        %682 = vmatpush.bf16.msra.mxu0 %v604
        %683 = vmatpush.bf16.msra.mxu0 %v602
        %684 = vmatpush.bf16.msra.mxu0 %v600
        %685 = vmatpush.bf16.msra.mxu0 %v598
        %686 = vmatpush.bf16.msra.mxu0 %v596
        %687 = vmatpush.bf16.msra.mxu0 %v594
        %688 = vmatpush.bf16.msra.mxu0 %v592
        %689 = vmatmul.bf16.gmra.mxu0 %v440
        %v690 = vpop.f32.mrf.mxu0
        %v691 = vadd.f32 %v677, %v690
        %v692 = vpop.f32.mrf.mxu0
        %v693 = vadd.f32 %v679, %v692
        %694 = vdwg.mxu0
        %v695 = vmax.f32 %v663, 0.0
        %v696 = vmax.f32 %v691, 0.0
        %v697 = vmax.f32 %v665, 0.0
        %v698 = vmax.f32 %v693, 0.0
        %v699 = vpack.c.bf16 %v697, %v695
        %v700 = vpack.c.bf16 %v698, %v696
        %v701 = vld [vmem:[#allocation10] sm:$0xf]
        %v702 = vld [vmem:[#allocation10 + $0x4] sm:$0xf]
        %v703 = vld [vmem:[#allocation10 + $0x8] sm:$0xf]
        %v704 = vld [vmem:[#allocation10 + $0xc] sm:$0xf]
        %v705 = vld [vmem:[#allocation10 + $0x10] sm:$0xf]
        %v706 = vld [vmem:[#allocation10 + $0x14] sm:$0xf]
        %v707 = vld [vmem:[#allocation10 + $0x18] sm:$0xf]
        %v708 = vld [vmem:[#allocation10 + $0x1c] sm:$0xf]
        %v709 = vld [vmem:[#allocation10 + $0x20] sm:$0xf]
        %v710 = vld [vmem:[#allocation10 + $0x24] sm:$0xf]
        %v711 = vld [vmem:[#allocation10 + $0x28] sm:$0xf]
        %v712 = vld [vmem:[#allocation10 + $0x2c] sm:$0xf]
        %v713 = vld [vmem:[#allocation10 + $0x30] sm:$0xf]
        %v714 = vld [vmem:[#allocation10 + $0x34] sm:$0xf]
        %v715 = vld [vmem:[#allocation10 + $0x38] sm:$0xf]
        %v716 = vld [vmem:[#allocation10 + $0x3c] sm:$0xf]
        %v717 = vld [vmem:[#allocation10 + $0x40] sm:$0xf]
        %v718 = vld [vmem:[#allocation10 + $0x44] sm:$0xf]
        %v719 = vld [vmem:[#allocation10 + $0x48] sm:$0xf]
        %v720 = vld [vmem:[#allocation10 + $0x4c] sm:$0xf]
        %v721 = vld [vmem:[#allocation10 + $0x50] sm:$0xf]
        %v722 = vld [vmem:[#allocation10 + $0x54] sm:$0xf]
        %v723 = vld [vmem:[#allocation10 + $0x58] sm:$0xf]
        %v724 = vld [vmem:[#allocation10 + $0x5c] sm:$0xf]
        %v725 = vld [vmem:[#allocation10 + $0x60] sm:$0xf]
        %v726 = vld [vmem:[#allocation10 + $0x64] sm:$0xf]
        %v727 = vld [vmem:[#allocation10 + $0x68] sm:$0xf]
        %v728 = vld [vmem:[#allocation10 + $0x6c] sm:$0xf]
        %v729 = vld [vmem:[#allocation10 + $0x70] sm:$0xf]
        %v730 = vld [vmem:[#allocation10 + $0x74] sm:$0xf]
        %v731 = vld [vmem:[#allocation10 + $0x78] sm:$0xf]
        %v732 = vld [vmem:[#allocation10 + $0x7c] sm:$0xf]
        %v733 = vld [vmem:[%s6] sm:$0x1]
        %v735 = vperm.slane %v733, 0
        %v769 = vunpack.c.l.b16 %v701
        %v770 = vunpack.c.l.b16 %v702
        %v771 = vunpack.c.l.b16 %v703
        %v772 = vunpack.c.l.b16 %v704
        %v773 = vunpack.c.l.b16 %v705
        %v774 = vunpack.c.l.b16 %v706
        %v775 = vunpack.c.l.b16 %v707
        %v776 = vunpack.c.l.b16 %v708
        %v777 = vunpack.c.l.b16 %v709
        %v778 = vunpack.c.l.b16 %v710
        %v779 = vunpack.c.l.b16 %v711
        %v780 = vunpack.c.l.b16 %v712
        %v781 = vunpack.c.l.b16 %v713
        %v782 = vunpack.c.l.b16 %v714
        %v783 = vunpack.c.l.b16 %v715
        %v784 = vunpack.c.l.b16 %v716
        %v785 = vunpack.c.l.b16 %v717
        %v786 = vunpack.c.l.b16 %v718
        %v787 = vunpack.c.l.b16 %v719
        %v788 = vunpack.c.l.b16 %v720
        %v789 = vunpack.c.l.b16 %v721
        %v790 = vunpack.c.l.b16 %v722
        %v791 = vunpack.c.l.b16 %v723
        %v792 = vunpack.c.l.b16 %v724
        %v793 = vunpack.c.l.b16 %v725
        %v794 = vunpack.c.l.b16 %v726
        %v795 = vunpack.c.l.b16 %v727
        %v796 = vunpack.c.l.b16 %v728
        %v797 = vunpack.c.l.b16 %v729
        %v798 = vunpack.c.l.b16 %v730
        %v799 = vunpack.c.l.b16 %v731
        %v800 = vunpack.c.l.b16 %v732
        %v801 = vpack.c.b16 %v770, %v769
        %v802 = vpack.c.b16 %v772, %v771
        %v803 = vpack.c.b16 %v774, %v773
        %v804 = vpack.c.b16 %v776, %v775
        %v805 = vpack.c.b16 %v778, %v777
        %v806 = vpack.c.b16 %v780, %v779
        %v807 = vpack.c.b16 %v782, %v781
        %v808 = vpack.c.b16 %v784, %v783
        %v809 = vpack.c.b16 %v786, %v785
        %v810 = vpack.c.b16 %v788, %v787
        %v811 = vpack.c.b16 %v790, %v789
        %v812 = vpack.c.b16 %v792, %v791
        %v813 = vpack.c.b16 %v794, %v793
        %v814 = vpack.c.b16 %v796, %v795
        %v815 = vpack.c.b16 %v798, %v797
        %v816 = vpack.c.b16 %v800, %v799
        %833 = vmatpush.bf16.msra.mxu0 %v808
        %834 = vmatpush.bf16.msra.mxu0 %v807
        %835 = vmatpush.bf16.msra.mxu0 %v806
        %836 = vmatpush.bf16.msra.mxu0 %v805
        %837 = vmatpush.bf16.msra.mxu0 %v804
        %838 = vmatpush.bf16.msra.mxu0 %v803
        %839 = vmatpush.bf16.msra.mxu0 %v802
        %840 = vmatpush.bf16.msra.mxu0 %v801
        %841 = vmatmul.bf16.gmra.mxu0 %v699
        %v842 = vpop.f32.mrf.mxu0
        %v843 = vadd.f32 %v735, %v842
        %v844 = vpop.f32.mrf.mxu0
        %v845 = vadd.f32 %v735, %v844
        %846 = vdwg.mxu0
        %847 = vmatpush.bf16.msra.mxu0 %v816
        %848 = vmatpush.bf16.msra.mxu0 %v815
        %849 = vmatpush.bf16.msra.mxu0 %v814
        %850 = vmatpush.bf16.msra.mxu0 %v813
        %851 = vmatpush.bf16.msra.mxu0 %v812
        %852 = vmatpush.bf16.msra.mxu0 %v811
        %853 = vmatpush.bf16.msra.mxu0 %v810
        %854 = vmatpush.bf16.msra.mxu0 %v809
        %855 = vmatmul.bf16.gmra.mxu0 %v700
        %v856 = vpop.f32.mrf.mxu0
        %v857 = vadd.f32 %v843, %v856
        %v858 = vpop.f32.mrf.mxu0
        %v859 = vadd.f32 %v845, %v858
        %860 = vdwg.mxu0
        %861 = vst [vmem:[%s362] sm:$0xff] %v857
        %862 = vst [vmem:[%s362 + $0x8] sm:$0xff] %v859
        %s863 = sand.u32 %s186, 1
        %s864 = scalar_lea.sflag [#allocation4], %s863
        %s865 = sand.u32 %s186, 1
        %s866 = smul.addr %s865, 16
        %s867 = scalar_lea.vmem [#allocation11], %s866
        // Predicated region
        $region69: #{tpu_custom_call.1} parent=47 // pred_check
          %p868 = pneg %p196
        $region70: #{tpu_custom_call.1} parent=47 // pred_check_branch
          %870 = sbr.rel (%p868) target = $region72
        $region71: #{tpu_custom_call.1} parent=47 // pred_region
          %s871 = smul.u32 2, %s26
          %873 = vsyncadd %s864, 0
          %s874 = smul.addr %s871, 8
          %s875 = scalar_lea.hbm %s7, %s874
          %s876 = sshll.u32 %s867, 4
          %s877 = int_to_ptr.vmem [resolvable:$true] %s876
          %s878 = sshll.u32 %s875, 4
          %s879 = int_to_ptr.hbm [resolvable:$true] %s878
          %884 = dma.vmem_to_hbm [thread:$0]  %s877, 256, %s879, %s864, 128, 128, 8
        $region72: #{tpu_custom_call.1} parent=47 // pred_fallthru
          _
      $region48: #{tpu_custom_call.1} parent=5 // pred_fallthru
        _
      %p885 = scmp.le.s32.totalorder 2, %s21
      // Predicated region
      $region73: #{tpu_custom_call.1} parent=5 // pred_check
        %p886 = pneg %p885
      $region74: #{tpu_custom_call.1} parent=5 // pred_check_branch
        %888 = sbr.rel (%p886) target = $region76
      $region75: #{tpu_custom_call.1} parent=5 // pred_region
        %s889 = ssub.s32 %s21, 2
        // Predicated region
        $region77: #{tpu_custom_call.1} parent=75 // pred_check
          %p890 = pneg %p202
        $region78: #{tpu_custom_call.1} parent=75 // pred_check_branch
          %892 = sbr.rel (%p890) target = $region80
        $region79: #{tpu_custom_call.1} parent=75 // pred_region
          %s893 = sand.u32 %s187, 1
          %s894 = scalar_lea.sflag [#allocation4], %s893
          %s895 = sand.u32 %s187, 1
          %s896 = smul.addr %s895, 16
          %s897 = scalar_lea.vmem [#allocation11], %s896
          %899 = dma.done %s894, 256
        $region80: #{tpu_custom_call.1} parent=75 // pred_fallthru
          _
      $region76: #{tpu_custom_call.1} parent=5 // pred_fallthru
        _
    $region6: #{tpu_custom_call.1} parent=1 // loop_footer
      %s25 = sadd.s32 1, %s21
    $region7: #{tpu_custom_call.1} parent=1 // loop_footer_branch
      %20 = sbr.rel target = $region3
    $region8: #{tpu_custom_call.1} parent=1 // loop_exit
      _
    %900 = vsyncpa [#allocation3], 1
    %s901 = scalar_lea.sflag [#allocation3], 1
    %902 = vsyncpa %s901, 1
    %903 = vsyncpa [#allocation6], 1
    %904 = vsyncpa [#allocation9], 1
    %905 = vsyncpa [#allocation4], 1
    %s906 = scalar_lea.sflag [#allocation4], 1
    %907 = vsyncpa %s906, 1

</llo_original>
